<compile_context>
chip_gen: v7x
topology: tpu7x:2x2x1
jax: 0.10.0
libtpu: 0.0.40
codegen_flags: <defaults>
</compile_context>

<pallas_src>
import jax
import jax.numpy as jnp
from jax.experimental import pallas as pl
from jax.experimental.pallas import tpu as pltpu

_LANE = 128
_SUB = 8
_MAX_TILE_ROWS = 1024  # 1024x128 f32 = 512 KiB/input/buffer; safe on v5e/v6e/v7x


# ---------------------------------------------------------------------------
# Fused BCE + Dice reduction kernel (single pass over logits/mask)
# ---------------------------------------------------------------------------
def _fused_bce_dice_kernel(dims_ref, x_ref, y_ref, out_ref, acc_ref):
    """dims_ref (SMEM, (2,) i32): [full_rows, rem] with n = full_rows*128 + rem.

    out_ref (SMEM, (4,) f32): [bce_sum, intersection, sigmoid_sum, target_sum].
    acc_ref (VMEM, (4, 8, 128) f32): vreg-sized accumulator; the hot loop folds
    each tile to one vreg (VPU tree-add) and does a single add per quantity.
    """
    i = pl.program_id(0)
    tile_rows = x_ref.shape[0]

    @pl.when(i == 0)
    def _():
        acc_ref[...] = jnp.zeros_like(acc_ref)

    full_rows = dims_ref[0]
    rem = dims_ref[1]
    base_row = i * tile_rows
    tile_is_full = (base_row + tile_rows) <= full_rows

    def _fold(t):
        # (tile_rows, 128) -> (tile_rows//8, 8, 128), sum over leading axis:
        # pure VPU adds (sublane/lane positions preserved), no XLU work.
        return jnp.sum(t.reshape(tile_rows // _SUB, _SUB, _LANE), axis=0)

    def _terms(x, y):
        # Shared transcendental: e = exp(-|x|) feeds both log1p (BCE) and sigmoid.
        e = jnp.exp(-jnp.abs(x))
        # Numerically stable BCE-with-logits: max(x,0) - x*y + log1p(exp(-|x|))
        bce = jnp.maximum(x, 0.0) - x * y + jnp.log1p(e)
        inv = 1.0 / (1.0 + e)
        p = jnp.where(x >= 0.0, inv, e * inv)  # sigmoid(x) from the shared exp
        return bce, p * y, p, y

    def _accumulate(bce, inter, p, yv):
        acc_ref[0] += _fold(bce)
        acc_ref[1] += _fold(inter)
        acc_ref[2] += _fold(p)
        acc_ref[3] += _fold(yv)

    # Fast path: full tile, no mask work at all.
    @pl.when(tile_is_full)
    def _():
        x = x_ref[...].astype(jnp.float32)
        y = y_ref[...].astype(jnp.float32)
        _accumulate(*_terms(x, y))

    # Tail path: only the (single) ragged last tile builds the validity mask.
    @pl.when(jnp.logical_not(tile_is_full))
    def _():
        row_ids = base_row + jax.lax.broadcasted_iota(
            jnp.int32, (tile_rows, _LANE), 0)
        lane_ids = jax.lax.broadcasted_iota(jnp.int32, (tile_rows, _LANE), 1)
        valid = (row_ids < full_rows) | ((row_ids == full_rows) &
                                         (lane_ids < rem))
        # Mask inputs BEFORE the transcendentals so OOB garbage can't make NaNs.
        x = jnp.where(valid, x_ref[...].astype(jnp.float32), 0.0)
        y = jnp.where(valid, y_ref[...].astype(jnp.float32), 0.0)
        bce, inter, p, yv = _terms(x, y)
        vf = valid.astype(jnp.float32)
        # bce(0,0)=log(2) and sigmoid(0)=0.5 are nonzero -> mask those two;
        # inter = p*y and yv = y are already zero on invalid lanes.
        _accumulate(bce * vf, inter, p * vf, yv)

    @pl.when(i == pl.num_programs(0) - 1)
    def _():
        out_ref[0] = jnp.sum(acc_ref[0])
        out_ref[1] = jnp.sum(acc_ref[1])
        out_ref[2] = jnp.sum(acc_ref[2])
        out_ref[3] = jnp.sum(acc_ref[3])


# ---------------------------------------------------------------------------
# Wrapper: lane-dense view (copy-free when n % 1024 == 0), single pallas_call
# ---------------------------------------------------------------------------
def _fused_sums(logits, mask, *, max_tile_rows=_MAX_TILE_ROWS):
    """Return (sums[4], n) where sums = [bce_sum, inter, p_sum, y_sum]."""
    if not jnp.issubdtype(logits.dtype, jnp.floating):
        logits = logits.astype(jnp.float32)
    if not jnp.issubdtype(mask.dtype, jnp.floating):
        mask = mask.astype(jnp.float32)

    x = logits.reshape(-1)
    y = mask.reshape(-1)
    n = x.shape[0]

    rows = -(-n // _LANE)                 # ceil(n / 128)
    rows8 = -(-rows // _SUB) * _SUB       # round rows up to sublane multiple
    n_slab = rows8 * _LANE
    if n_slab != n:
        # Minimal pad to (8,128) granularity only (never to tile_rows*128).
        x = jnp.pad(x, (0, n_slab - n))
        y = jnp.pad(y, (0, n_slab - n))
    x2 = x.reshape(rows8, _LANE)          # copy-free when no pad was needed
    y2 = y.reshape(rows8, _LANE)

    tile_rows = min(max_tile_rows, rows8)  # rows8 is a multiple of 8, so is this
    grid = pl.cdiv(rows8, tile_rows)       # last block may be ragged -> masked

    dims = jnp.array([n // _LANE, n % _LANE], dtype=jnp.int32)
    tile_spec = pl.BlockSpec((tile_rows, _LANE), lambda i, dims_ref: (i, 0))

    sums = pl.pallas_call(
        _fused_bce_dice_kernel,
        out_shape=jax.ShapeDtypeStruct((4,), jnp.float32),
        grid_spec=pltpu.PrefetchScalarGridSpec(
            num_scalar_prefetch=1,
            grid=(grid,),
            in_specs=[tile_spec, tile_spec],
            out_specs=pl.BlockSpec(memory_space=pltpu.SMEM),
            scratch_shapes=[pltpu.VMEM((4, _SUB, _LANE), jnp.float32)],
        ),
        compiler_params=pltpu.CompilerParams(
            dimension_semantics=("arbitrary",)),
    )(dims, x2, y2)
    return sums, n


# ---------------------------------------------------------------------------
# Individual loss functions (signature: (logits, mask) -> scalar).
# They can optionally consume precomputed fused sums (shared single pass).
# ---------------------------------------------------------------------------
def bce_with_logits_loss(logits, mask, *, sums=None, n=None):
    if sums is None:
        sums, n = _fused_sums(logits, mask)
    return sums[0] / jnp.float32(n)


bce_with_logits_loss._uses_fused_sums = True


def soft_dice_loss(logits, mask, *, sums=None, n=None, eps=1e-6):
    if sums is None:
        sums, n = _fused_sums(logits, mask)
    inter, p_sum, y_sum = sums[1], sums[2], sums[3]
    return 1.0 - (2.0 * inter + eps) / (p_sum + y_sum + eps)


soft_dice_loss._uses_fused_sums = True


def never_called_loss(logits, mask, **kwargs):  # prefactor 0 -> must be skipped
    raise RuntimeError("loss with zero prefactor must not be evaluated")


# ---------------------------------------------------------------------------
# MultiLoss: same forward semantics as the PyTorch module.
# The fused reduction runs once per call and feeds every loss that can use it.
# ---------------------------------------------------------------------------
class MultiLoss:
    """Combines multiple losses with weighting (JAX/Pallas version)."""

    def __init__(self, loss_fns):
        self.loss_fns = loss_fns

    def __call__(self, logits, mask):
        active = [(fn, w) for fn, w in self.loss_fns.items() if w != 0]

        fused = None
        if any(getattr(fn, "_uses_fused_sums", False) for fn, _ in active):
            fused = _fused_sums(logits, mask)   # single pass over HBM

        loss = jnp.zeros((), dtype=jnp.float32)
        for fn, w in active:
            if getattr(fn, "_uses_fused_sums", False):
                sums, n = fused
                term = fn(logits, mask, sums=sums, n=n)
            else:
                term = fn(logits, mask)
            loss = loss + w * term
        return loss


# ---------------------------------------------------------------------------
# Pure-JAX reference for verification
# ---------------------------------------------------------------------------
def _reference(logits, mask, w_bce, w_dice, eps=1e-6):
    x = logits.astype(jnp.float32)
    y = mask.astype(jnp.float32)
    bce = jnp.mean(jnp.maximum(x, 0.0) - x * y + jnp.log1p(jnp.exp(-jnp.abs(x))))
    p = jax.nn.sigmoid(x)
    dice = 1.0 - (2.0 * jnp.sum(p * y) + eps) / (jnp.sum(p) + jnp.sum(y) + eps)
    return w_bce * bce + w_dice * dice


if __name__ == "__main__":
    key = jax.random.PRNGKey(0)
    k1, k2 = jax.random.split(key)

    B, C, H, W = 2, 4, 16, 16  # NCHW, as in PyTorch
    logits = jax.random.normal(k1, (B, C, H, W), dtype=jnp.float32)
    mask = (jax.random.uniform(k2, (B, C, H, W)) > 0.5).astype(jnp.float32)

    multi_loss = MultiLoss({
        bce_with_logits_loss: 1.0,
        soft_dice_loss: 0.5,
        never_called_loss: 0.0,   # skipped, exactly like the PyTorch forward
    })

    loss = multi_loss(logits, mask)
    loss = jax.block_until_ready(loss)

    ref = _reference(logits, mask, 1.0, 0.5)
    assert jnp.allclose(loss, ref, rtol=1e-5, atol=1e-5), (loss, ref)

    print("KERNEL_OK")
</pallas_src>

<mosaic_0001>
module attributes {stable_mosaic.version = 11 : i64} {
  func.func @_fused_bce_dice_kernel(%arg0: i32, %arg1: memref<2xi32, #tpu.memory_space<smem>>, %arg2: memref<16x128xf32, #tpu.memory_space<vmem>>, %arg3: memref<16x128xf32, #tpu.memory_space<vmem>>, %arg4: memref<4xf32, #tpu.memory_space<smem>>, %arg5: memref<4x8x128xf32, #tpu.memory_space<vmem>>) attributes {dimension_semantics = [#tpu.dimension_semantics<arbitrary>], iteration_bounds = array<i64: 1>, scalar_prefetch = 1 : i64, scratch_operands = 1 : i64, tpu.core_type = #tpu.core_type<tc>, window_params = [{transform_indices = @transform_0, window_bounds = array<i64: 16, 128>}, {transform_indices = @transform_1, window_bounds = array<i64: 16, 128>}, {transform_indices = @transform_2, window_bounds = array<i64: 4>}]} {
    %c0_i32 = arith.constant 0 : i32
    %0 = arith.cmpi eq, %arg0, %c0_i32 : i32
    %1 = arith.extui %0 : i1 to i32
    %c0_i32_0 = arith.constant 0 : i32
    %2 = arith.cmpi ne, %1, %c0_i32_0 : i32
    scf.if %2 {
      %cst = arith.constant 0.000000e+00 : f32
      %16 = vector.broadcast %cst : f32 to vector<4x8x128xf32>
      %c0_6 = arith.constant 0 : index
      %c0_7 = arith.constant 0 : index
      %c0_8 = arith.constant 0 : index
      %17 = vector.load %arg5[%c0_6, %c0_7, %c0_8] : memref<4x8x128xf32, #tpu.memory_space<vmem>>, vector<4x8x128xf32>
      tpu.vector_store %arg5[%c0_6, %c0_7, %c0_8], %16 {strides = array<i32>} : memref<4x8x128xf32, #tpu.memory_space<vmem>>, vector<4x8x128xf32>,
    } else {
    }
    %c0 = arith.constant 0 : index
    %3 = memref.load %arg1[%c0] : memref<2xi32, #tpu.memory_space<smem>>
    %c1 = arith.constant 1 : index
    %4 = memref.load %arg1[%c1] : memref<2xi32, #tpu.memory_space<smem>>
    %c16_i32 = arith.constant 16 : i32
    %5 = arith.muli %arg0, %c16_i32 : i32
    %c16_i32_1 = arith.constant 16 : i32
    %6 = arith.addi %5, %c16_i32_1 : i32
    %7 = arith.cmpi sle, %6, %3 : i32
    %8 = arith.extui %7 : i1 to i32
    %c0_i32_2 = arith.constant 0 : i32
    %9 = arith.cmpi ne, %8, %c0_i32_2 : i32
    scf.if %9 {
      %c0_6 = arith.constant 0 : index
      %c0_7 = arith.constant 0 : index
      %16 = vector.load %arg2[%c0_6, %c0_7] : memref<16x128xf32, #tpu.memory_space<vmem>>, vector<16x128xf32>
      %c0_8 = arith.constant 0 : index
      %c0_9 = arith.constant 0 : index
      %17 = vector.load %arg3[%c0_8, %c0_9] : memref<16x128xf32, #tpu.memory_space<vmem>>, vector<16x128xf32>
      %18 = math.absf %16 : vector<16x128xf32>
      %cst = arith.constant 0.000000e+00 : f32
      %19 = vector.broadcast %cst : f32 to vector<16x128xf32>
      %20 = arith.subf %19, %18 : vector<16x128xf32>
      %21 = math.exp %20 : vector<16x128xf32>
      %cst_10 = arith.constant 0.000000e+00 : f32
      %22 = vector.broadcast %cst_10 : f32 to vector<16x128xf32>
      %23 = arith.maximumf %16, %22 : vector<16x128xf32>
      %24 = arith.mulf %16, %17 : vector<16x128xf32>
      %25 = arith.subf %23, %24 : vector<16x128xf32>
      %26 = math.log1p %21 : vector<16x128xf32>
      %27 = arith.addf %25, %26 : vector<16x128xf32>
      %cst_11 = arith.constant 1.000000e+00 : f32
      %28 = vector.broadcast %cst_11 : f32 to vector<16x128xf32>
      %29 = arith.addf %28, %21 : vector<16x128xf32>
      %cst_12 = arith.constant 1.000000e+00 : f32
      %30 = vector.broadcast %cst_12 : f32 to vector<16x128xf32>
      %31 = arith.divf %30, %29 : vector<16x128xf32>
      %cst_13 = arith.constant 0.000000e+00 : f32
      %32 = vector.broadcast %cst_13 : f32 to vector<16x128xf32>
      %33 = arith.cmpf oge, %16, %32 : vector<16x128xf32>
      %34 = arith.mulf %21, %31 : vector<16x128xf32>
      %35 = arith.select %33, %31, %34 : vector<16x128xi1>, vector<16x128xf32>
      %36 = arith.mulf %35, %17 : vector<16x128xf32>
      %c0_14 = arith.constant 0 : index
      %c0_15 = arith.constant 0 : index
      %c0_16 = arith.constant 0 : index
      %37 = vector.load %arg5[%c0_14, %c0_15, %c0_16] : memref<4x8x128xf32, #tpu.memory_space<vmem>>, vector<1x8x128xf32>
      %38 = vector.shape_cast %37 : vector<1x8x128xf32> to vector<8x128xf32>
      %39 = vector.shape_cast %27 : vector<16x128xf32> to vector<2x8x128xf32>
      %cst_17 = arith.constant dense<0.000000e+00> : vector<8x128xf32>
      %40 = vector.multi_reduction <add>, %39, %cst_17 [0] : vector<2x8x128xf32> to vector<8x128xf32>
      %41 = arith.addf %38, %40 : vector<8x128xf32>
      %c0_18 = arith.constant 0 : index
      %c0_19 = arith.constant 0 : index
      %c0_20 = arith.constant 0 : index
      %42 = vector.load %arg5[%c0_18, %c0_19, %c0_20] : memref<4x8x128xf32, #tpu.memory_space<vmem>>, vector<1x8x128xf32>
      %43 = vector.shape_cast %42 : vector<1x8x128xf32> to vector<8x128xf32>
      %44 = vector.shape_cast %41 : vector<8x128xf32> to vector<1x8x128xf32>
      tpu.vector_store %arg5[%c0_18, %c0_19, %c0_20], %44 {strides = array<i32>} : memref<4x8x128xf32, #tpu.memory_space<vmem>>, vector<1x8x128xf32>,
      %c1_21 = arith.constant 1 : index
      %c0_22 = arith.constant 0 : index
      %c0_23 = arith.constant 0 : index
      %45 = vector.load %arg5[%c1_21, %c0_22, %c0_23] : memref<4x8x128xf32, #tpu.memory_space<vmem>>, vector<1x8x128xf32>
      %46 = vector.shape_cast %45 : vector<1x8x128xf32> to vector<8x128xf32>
      %47 = vector.shape_cast %36 : vector<16x128xf32> to vector<2x8x128xf32>
      %cst_24 = arith.constant dense<0.000000e+00> : vector<8x128xf32>
      %48 = vector.multi_reduction <add>, %47, %cst_24 [0] : vector<2x8x128xf32> to vector<8x128xf32>
      %49 = arith.addf %46, %48 : vector<8x128xf32>
      %c1_25 = arith.constant 1 : index
      %c0_26 = arith.constant 0 : index
      %c0_27 = arith.constant 0 : index
      %50 = vector.load %arg5[%c1_25, %c0_26, %c0_27] : memref<4x8x128xf32, #tpu.memory_space<vmem>>, vector<1x8x128xf32>
      %51 = vector.shape_cast %50 : vector<1x8x128xf32> to vector<8x128xf32>
      %52 = vector.shape_cast %49 : vector<8x128xf32> to vector<1x8x128xf32>
      tpu.vector_store %arg5[%c1_25, %c0_26, %c0_27], %52 {strides = array<i32>} : memref<4x8x128xf32, #tpu.memory_space<vmem>>, vector<1x8x128xf32>,
      %c2 = arith.constant 2 : index
      %c0_28 = arith.constant 0 : index
      %c0_29 = arith.constant 0 : index
      %53 = vector.load %arg5[%c2, %c0_28, %c0_29] : memref<4x8x128xf32, #tpu.memory_space<vmem>>, vector<1x8x128xf32>
      %54 = vector.shape_cast %53 : vector<1x8x128xf32> to vector<8x128xf32>
      %55 = vector.shape_cast %35 : vector<16x128xf32> to vector<2x8x128xf32>
      %cst_30 = arith.constant dense<0.000000e+00> : vector<8x128xf32>
      %56 = vector.multi_reduction <add>, %55, %cst_30 [0] : vector<2x8x128xf32> to vector<8x128xf32>
      %57 = arith.addf %54, %56 : vector<8x128xf32>
      %c2_31 = arith.constant 2 : index
      %c0_32 = arith.constant 0 : index
      %c0_33 = arith.constant 0 : index
      %58 = vector.load %arg5[%c2_31, %c0_32, %c0_33] : memref<4x8x128xf32, #tpu.memory_space<vmem>>, vector<1x8x128xf32>
      %59 = vector.shape_cast %58 : vector<1x8x128xf32> to vector<8x128xf32>
      %60 = vector.shape_cast %57 : vector<8x128xf32> to vector<1x8x128xf32>
      tpu.vector_store %arg5[%c2_31, %c0_32, %c0_33], %60 {strides = array<i32>} : memref<4x8x128xf32, #tpu.memory_space<vmem>>, vector<1x8x128xf32>,
      %c3 = arith.constant 3 : index
      %c0_34 = arith.constant 0 : index
      %c0_35 = arith.constant 0 : index
      %61 = vector.load %arg5[%c3, %c0_34, %c0_35] : memref<4x8x128xf32, #tpu.memory_space<vmem>>, vector<1x8x128xf32>
      %62 = vector.shape_cast %61 : vector<1x8x128xf32> to vector<8x128xf32>
      %63 = vector.shape_cast %17 : vector<16x128xf32> to vector<2x8x128xf32>
      %cst_36 = arith.constant dense<0.000000e+00> : vector<8x128xf32>
      %64 = vector.multi_reduction <add>, %63, %cst_36 [0] : vector<2x8x128xf32> to vector<8x128xf32>
      %65 = arith.addf %62, %64 : vector<8x128xf32>
      %c3_37 = arith.constant 3 : index
      %c0_38 = arith.constant 0 : index
      %c0_39 = arith.constant 0 : index
      %66 = vector.load %arg5[%c3_37, %c0_38, %c0_39] : memref<4x8x128xf32, #tpu.memory_space<vmem>>, vector<1x8x128xf32>
      %67 = vector.shape_cast %66 : vector<1x8x128xf32> to vector<8x128xf32>
      %68 = vector.shape_cast %65 : vector<8x128xf32> to vector<1x8x128xf32>
      tpu.vector_store %arg5[%c3_37, %c0_38, %c0_39], %68 {strides = array<i32>} : memref<4x8x128xf32, #tpu.memory_space<vmem>>, vector<1x8x128xf32>,
    } else {
    }
    %true = arith.constant true
    %10 = arith.xori %7, %true : i1
    %11 = arith.extui %10 : i1 to i32
    %c0_i32_3 = arith.constant 0 : i32
    %12 = arith.cmpi ne, %11, %c0_i32_3 : i32
    scf.if %12 {
      %16 = tpu.iota {dimensions = array<i32: 0>} : vector<16x128xi32>
      %17 = vector.broadcast %5 : i32 to vector<16x128xi32>
      %18 = arith.addi %17, %16 : vector<16x128xi32>
      %19 = tpu.iota {dimensions = array<i32: 1>} : vector<16x128xi32>
      %20 = vector.broadcast %3 : i32 to vector<16x128xi32>
      %21 = arith.cmpi slt, %18, %20 : vector<16x128xi32>
      %22 = vector.broadcast %3 : i32 to vector<16x128xi32>
      %23 = arith.cmpi eq, %18, %22 : vector<16x128xi32>
      %24 = vector.broadcast %4 : i32 to vector<16x128xi32>
      %25 = arith.cmpi slt, %19, %24 : vector<16x128xi32>
      %26 = arith.andi %23, %25 : vector<16x128xi1>
      %27 = arith.ori %21, %26 : vector<16x128xi1>
      %c0_6 = arith.constant 0 : index
      %c0_7 = arith.constant 0 : index
      %28 = vector.load %arg2[%c0_6, %c0_7] : memref<16x128xf32, #tpu.memory_space<vmem>>, vector<16x128xf32>
      %cst = arith.constant 0.000000e+00 : f32
      %29 = vector.broadcast %cst : f32 to vector<16x128xf32>
      %30 = arith.select %27, %28, %29 : vector<16x128xi1>, vector<16x128xf32>
      %c0_8 = arith.constant 0 : index
      %c0_9 = arith.constant 0 : index
      %31 = vector.load %arg3[%c0_8, %c0_9] : memref<16x128xf32, #tpu.memory_space<vmem>>, vector<16x128xf32>
      %cst_10 = arith.constant 0.000000e+00 : f32
      %32 = vector.broadcast %cst_10 : f32 to vector<16x128xf32>
      %33 = arith.select %27, %31, %32 : vector<16x128xi1>, vector<16x128xf32>
      %34 = math.absf %30 : vector<16x128xf32>
      %cst_11 = arith.constant 0.000000e+00 : f32
      %35 = vector.broadcast %cst_11 : f32 to vector<16x128xf32>
      %36 = arith.subf %35, %34 : vector<16x128xf32>
      %37 = math.exp %36 : vector<16x128xf32>
      %cst_12 = arith.constant 0.000000e+00 : f32
      %38 = vector.broadcast %cst_12 : f32 to vector<16x128xf32>
      %39 = arith.maximumf %30, %38 : vector<16x128xf32>
      %40 = arith.mulf %30, %33 : vector<16x128xf32>
      %41 = arith.subf %39, %40 : vector<16x128xf32>
      %42 = math.log1p %37 : vector<16x128xf32>
      %43 = arith.addf %41, %42 : vector<16x128xf32>
      %cst_13 = arith.constant 1.000000e+00 : f32
      %44 = vector.broadcast %cst_13 : f32 to vector<16x128xf32>
      %45 = arith.addf %44, %37 : vector<16x128xf32>
      %cst_14 = arith.constant 1.000000e+00 : f32
      %46 = vector.broadcast %cst_14 : f32 to vector<16x128xf32>
      %47 = arith.divf %46, %45 : vector<16x128xf32>
      %cst_15 = arith.constant 0.000000e+00 : f32
      %48 = vector.broadcast %cst_15 : f32 to vector<16x128xf32>
      %49 = arith.cmpf oge, %30, %48 : vector<16x128xf32>
      %50 = arith.mulf %37, %47 : vector<16x128xf32>
      %51 = arith.select %49, %47, %50 : vector<16x128xi1>, vector<16x128xf32>
      %52 = arith.mulf %51, %33 : vector<16x128xf32>
      %53 = arith.extui %27 : vector<16x128xi1> to vector<16x128xi32>
      %54 = arith.sitofp %53 : vector<16x128xi32> to vector<16x128xf32>
      %55 = arith.mulf %43, %54 : vector<16x128xf32>
      %56 = arith.mulf %51, %54 : vector<16x128xf32>
      %c0_16 = arith.constant 0 : index
      %c0_17 = arith.constant 0 : index
      %c0_18 = arith.constant 0 : index
      %57 = vector.load %arg5[%c0_16, %c0_17, %c0_18] : memref<4x8x128xf32, #tpu.memory_space<vmem>>, vector<1x8x128xf32>
      %58 = vector.shape_cast %57 : vector<1x8x128xf32> to vector<8x128xf32>
      %59 = vector.shape_cast %55 : vector<16x128xf32> to vector<2x8x128xf32>
      %cst_19 = arith.constant dense<0.000000e+00> : vector<8x128xf32>
      %60 = vector.multi_reduction <add>, %59, %cst_19 [0] : vector<2x8x128xf32> to vector<8x128xf32>
      %61 = arith.addf %58, %60 : vector<8x128xf32>
      %c0_20 = arith.constant 0 : index
      %c0_21 = arith.constant 0 : index
      %c0_22 = arith.constant 0 : index
      %62 = vector.load %arg5[%c0_20, %c0_21, %c0_22] : memref<4x8x128xf32, #tpu.memory_space<vmem>>, vector<1x8x128xf32>
      %63 = vector.shape_cast %62 : vector<1x8x128xf32> to vector<8x128xf32>
      %64 = vector.shape_cast %61 : vector<8x128xf32> to vector<1x8x128xf32>
      tpu.vector_store %arg5[%c0_20, %c0_21, %c0_22], %64 {strides = array<i32>} : memref<4x8x128xf32, #tpu.memory_space<vmem>>, vector<1x8x128xf32>,
      %c1_23 = arith.constant 1 : index
      %c0_24 = arith.constant 0 : index
      %c0_25 = arith.constant 0 : index
      %65 = vector.load %arg5[%c1_23, %c0_24, %c0_25] : memref<4x8x128xf32, #tpu.memory_space<vmem>>, vector<1x8x128xf32>
      %66 = vector.shape_cast %65 : vector<1x8x128xf32> to vector<8x128xf32>
      %67 = vector.shape_cast %52 : vector<16x128xf32> to vector<2x8x128xf32>
      %cst_26 = arith.constant dense<0.000000e+00> : vector<8x128xf32>
      %68 = vector.multi_reduction <add>, %67, %cst_26 [0] : vector<2x8x128xf32> to vector<8x128xf32>
      %69 = arith.addf %66, %68 : vector<8x128xf32>
      %c1_27 = arith.constant 1 : index
      %c0_28 = arith.constant 0 : index
      %c0_29 = arith.constant 0 : index
      %70 = vector.load %arg5[%c1_27, %c0_28, %c0_29] : memref<4x8x128xf32, #tpu.memory_space<vmem>>, vector<1x8x128xf32>
      %71 = vector.shape_cast %70 : vector<1x8x128xf32> to vector<8x128xf32>
      %72 = vector.shape_cast %69 : vector<8x128xf32> to vector<1x8x128xf32>
      tpu.vector_store %arg5[%c1_27, %c0_28, %c0_29], %72 {strides = array<i32>} : memref<4x8x128xf32, #tpu.memory_space<vmem>>, vector<1x8x128xf32>,
      %c2 = arith.constant 2 : index
      %c0_30 = arith.constant 0 : index
      %c0_31 = arith.constant 0 : index
      %73 = vector.load %arg5[%c2, %c0_30, %c0_31] : memref<4x8x128xf32, #tpu.memory_space<vmem>>, vector<1x8x128xf32>
      %74 = vector.shape_cast %73 : vector<1x8x128xf32> to vector<8x128xf32>
      %75 = vector.shape_cast %56 : vector<16x128xf32> to vector<2x8x128xf32>
      %cst_32 = arith.constant dense<0.000000e+00> : vector<8x128xf32>
      %76 = vector.multi_reduction <add>, %75, %cst_32 [0] : vector<2x8x128xf32> to vector<8x128xf32>
      %77 = arith.addf %74, %76 : vector<8x128xf32>
      %c2_33 = arith.constant 2 : index
      %c0_34 = arith.constant 0 : index
      %c0_35 = arith.constant 0 : index
      %78 = vector.load %arg5[%c2_33, %c0_34, %c0_35] : memref<4x8x128xf32, #tpu.memory_space<vmem>>, vector<1x8x128xf32>
      %79 = vector.shape_cast %78 : vector<1x8x128xf32> to vector<8x128xf32>
      %80 = vector.shape_cast %77 : vector<8x128xf32> to vector<1x8x128xf32>
      tpu.vector_store %arg5[%c2_33, %c0_34, %c0_35], %80 {strides = array<i32>} : memref<4x8x128xf32, #tpu.memory_space<vmem>>, vector<1x8x128xf32>,
      %c3 = arith.constant 3 : index
      %c0_36 = arith.constant 0 : index
      %c0_37 = arith.constant 0 : index
      %81 = vector.load %arg5[%c3, %c0_36, %c0_37] : memref<4x8x128xf32, #tpu.memory_space<vmem>>, vector<1x8x128xf32>
      %82 = vector.shape_cast %81 : vector<1x8x128xf32> to vector<8x128xf32>
      %83 = vector.shape_cast %33 : vector<16x128xf32> to vector<2x8x128xf32>
      %cst_38 = arith.constant dense<0.000000e+00> : vector<8x128xf32>
      %84 = vector.multi_reduction <add>, %83, %cst_38 [0] : vector<2x8x128xf32> to vector<8x128xf32>
      %85 = arith.addf %82, %84 : vector<8x128xf32>
      %c3_39 = arith.constant 3 : index
      %c0_40 = arith.constant 0 : index
      %c0_41 = arith.constant 0 : index
      %86 = vector.load %arg5[%c3_39, %c0_40, %c0_41] : memref<4x8x128xf32, #tpu.memory_space<vmem>>, vector<1x8x128xf32>
      %87 = vector.shape_cast %86 : vector<1x8x128xf32> to vector<8x128xf32>
      %88 = vector.shape_cast %85 : vector<8x128xf32> to vector<1x8x128xf32>
      tpu.vector_store %arg5[%c3_39, %c0_40, %c0_41], %88 {strides = array<i32>} : memref<4x8x128xf32, #tpu.memory_space<vmem>>, vector<1x8x128xf32>,
    } else {
    }
    %c0_i32_4 = arith.constant 0 : i32
    %13 = arith.cmpi eq, %arg0, %c0_i32_4 : i32
    %14 = arith.extui %13 : i1 to i32
    %c0_i32_5 = arith.constant 0 : i32
    %15 = arith.cmpi ne, %14, %c0_i32_5 : i32
    scf.if %15 {
      %c0_6 = arith.constant 0 : index
      %c0_7 = arith.constant 0 : index
      %c0_8 = arith.constant 0 : index
      %16 = vector.load %arg5[%c0_6, %c0_7, %c0_8] : memref<4x8x128xf32, #tpu.memory_space<vmem>>, vector<1x8x128xf32>
      %17 = vector.shape_cast %16 : vector<1x8x128xf32> to vector<8x128xf32>
      %18 = vector.shape_cast %17 : vector<8x128xf32> to vector<1x8x128xf32>
      %cst = arith.constant dense<0.000000e+00> : vector<1xf32>
      %19 = vector.multi_reduction <add>, %18, %cst [1, 2] : vector<1x8x128xf32> to vector<1xf32>
      %20 = vector.shape_cast %19 : vector<1xf32> to vector<1x1x1xf32>
      %21 = vector.extract %20[0, 0, 0] : f32 from vector<1x1x1xf32>
      %c0_9 = arith.constant 0 : index
      %22 = memref.load %arg4[%c0_9] : memref<4xf32, #tpu.memory_space<smem>>
      memref.store %21, %arg4[%c0_9] : memref<4xf32, #tpu.memory_space<smem>>
      %c1_10 = arith.constant 1 : index
      %c0_11 = arith.constant 0 : index
      %c0_12 = arith.constant 0 : index
      %23 = vector.load %arg5[%c1_10, %c0_11, %c0_12] : memref<4x8x128xf32, #tpu.memory_space<vmem>>, vector<1x8x128xf32>
      %24 = vector.shape_cast %23 : vector<1x8x128xf32> to vector<8x128xf32>
      %25 = vector.shape_cast %24 : vector<8x128xf32> to vector<1x8x128xf32>
      %cst_13 = arith.constant dense<0.000000e+00> : vector<1xf32>
      %26 = vector.multi_reduction <add>, %25, %cst_13 [1, 2] : vector<1x8x128xf32> to vector<1xf32>
      %27 = vector.shape_cast %26 : vector<1xf32> to vector<1x1x1xf32>
      %28 = vector.extract %27[0, 0, 0] : f32 from vector<1x1x1xf32>
      %c1_14 = arith.constant 1 : index
      %29 = memref.load %arg4[%c1_14] : memref<4xf32, #tpu.memory_space<smem>>
      memref.store %28, %arg4[%c1_14] : memref<4xf32, #tpu.memory_space<smem>>
      %c2 = arith.constant 2 : index
      %c0_15 = arith.constant 0 : index
      %c0_16 = arith.constant 0 : index
      %30 = vector.load %arg5[%c2, %c0_15, %c0_16] : memref<4x8x128xf32, #tpu.memory_space<vmem>>, vector<1x8x128xf32>
      %31 = vector.shape_cast %30 : vector<1x8x128xf32> to vector<8x128xf32>
      %32 = vector.shape_cast %31 : vector<8x128xf32> to vector<1x8x128xf32>
      %cst_17 = arith.constant dense<0.000000e+00> : vector<1xf32>
      %33 = vector.multi_reduction <add>, %32, %cst_17 [1, 2] : vector<1x8x128xf32> to vector<1xf32>
      %34 = vector.shape_cast %33 : vector<1xf32> to vector<1x1x1xf32>
      %35 = vector.extract %34[0, 0, 0] : f32 from vector<1x1x1xf32>
      %c2_18 = arith.constant 2 : index
      %36 = memref.load %arg4[%c2_18] : memref<4xf32, #tpu.memory_space<smem>>
      memref.store %35, %arg4[%c2_18] : memref<4xf32, #tpu.memory_space<smem>>
      %c3 = arith.constant 3 : index
      %c0_19 = arith.constant 0 : index
      %c0_20 = arith.constant 0 : index
      %37 = vector.load %arg5[%c3, %c0_19, %c0_20] : memref<4x8x128xf32, #tpu.memory_space<vmem>>, vector<1x8x128xf32>
      %38 = vector.shape_cast %37 : vector<1x8x128xf32> to vector<8x128xf32>
      %39 = vector.shape_cast %38 : vector<8x128xf32> to vector<1x8x128xf32>
      %cst_21 = arith.constant dense<0.000000e+00> : vector<1xf32>
      %40 = vector.multi_reduction <add>, %39, %cst_21 [1, 2] : vector<1x8x128xf32> to vector<1xf32>
      %41 = vector.shape_cast %40 : vector<1xf32> to vector<1x1x1xf32>
      %42 = vector.extract %41[0, 0, 0] : f32 from vector<1x1x1xf32>
      %c3_22 = arith.constant 3 : index
      %43 = memref.load %arg4[%c3_22] : memref<4xf32, #tpu.memory_space<smem>>
      memref.store %42, %arg4[%c3_22] : memref<4xf32, #tpu.memory_space<smem>>
    } else {
    }
    return
  }
  func.func @transform_0(%arg0: i32, %arg1: memref<2xi32, #tpu.memory_space<smem>>) -> (i32, i32) {
    %c0_i32 = arith.constant 0 : i32
    %c0_i32_0 = arith.constant 0 : i32
    return %arg0, %c0_i32 : i32, i32
  }
  func.func @transform_1(%arg0: i32, %arg1: memref<2xi32, #tpu.memory_space<smem>>) -> (i32, i32) {
    %c0_i32 = arith.constant 0 : i32
    %c0_i32_0 = arith.constant 0 : i32
    return %arg0, %c0_i32 : i32, i32
  }
  func.func @transform_2(%arg0: i32, %arg1: memref<2xi32, #tpu.memory_space<smem>>) -> i32 {
    %c0_i32 = arith.constant 0 : i32
    %c0_i32_0 = arith.constant 0 : i32
    return %c0_i32 : i32
  }
}

</mosaic_0001>

<llo_original>
// kernel: tpu_custom_call.1
$region0: #{tpu_custom_call.1}
  #allocation0 [shape = 'u32[]', space=smem, size = 0x4, offset = 0x4, fixed_abs, tag = 'smem constant byte address 0x4 - core index']
  #allocation1 [shape = 'u32[144,128]{1,0:T(1,128)}', space=vmem, size = 0x12000, scoped, tag = 'internal scratch']
  #allocation2 [shape = 'f32[4,8,128]{2,1,0:T(8,128)}', space=vmem, size = 0x4000, scoped, tag = 'scratch operand']
  #allocation3 [shape = 's32[1]{0}', space=sflag, size = 0x4, scoped, tag = 'scoped memory for tpu_custom_call.1']
  #allocation4 [shape = 'u8[512]{0}', space=smem, size = 0x200, scoped, tag = 'prefetched SMEM operand 0']
  %s0 = inlined_call_operand.hbm [shape: s32[2], index: 0, kind: input, shape index: {}]
  %s1 = inlined_call_operand.hbm [shape: f32[16,128], index: 1, kind: input, shape index: {}]
  %s2 = inlined_call_operand.hbm [shape: f32[16,128], index: 2, kind: input, shape index: {}]
  %s3 = inlined_call_operand.hbm [shape: f32[4], index: 3, kind: output, shape index: {}]
  %s4 = sld [smem:[#allocation0]]
  $region42: #{tpu_custom_call.1} parent=0
    _
  %s6 = ssub.s32 1, %s4
  %s7 = scalar_select 0, %s6, %s4
  %9 = dma.hbm_to_smem %s0, 16, [#allocation4], [#allocation3]
  %10 = dma.done [#allocation3], 16
  %11 = sfence
  $region1: #{tpu_custom_call.1} parent=0
    #allocation5 [shape = 'u8[8192]{0}', space=vmem, size = 0x2000, scoped, tag = 'input window, operand 1, single buffered']
    #allocation6 [shape = 's32[1]{0}', space=sflag, size = 0x4, scoped, tag = 'scoped memory for tpu_custom_call.1']
    #allocation7 [shape = 's32[1]{0}', space=sflag, size = 0x4, scoped, tag = 'scoped memory for tpu_custom_call.1']
    #allocation8 [shape = 'u8[8192]{0}', space=vmem, size = 0x2000, scoped, tag = 'input window, operand 2, single buffered']
    #allocation9 [shape = 's32[1]{0}', space=sflag, size = 0x4, scoped, tag = 'scoped memory for tpu_custom_call.1']
    #allocation10 [shape = 'u8[512]{0}', space=smem, size = 0x200, scoped, tag = 'output window, operand 0, single buffered']
    %12 = vsyncpa [#allocation6], 0
    %13 = vsyncpa [#allocation9], 0
    %14 = vsyncpa [#allocation7], 0
    // Predicated region
    $region2: #{tpu_custom_call.1} parent=1 // pred_check
      _
    $region3: #{tpu_custom_call.1} parent=1 // pred_check_branch
      %16 = sbr.rel (0) target = $region5
    $region4: #{tpu_custom_call.1} parent=1 // pred_region
      %s18 = ssub.s32 256, 256
      %19 = vsyncadd [#allocation6], %s18
      %s20 = sshll.u32 [#allocation5], 4
      %s21 = int_to_ptr.vmem [resolvable:$true] %s20
      %26 = dma.hbm_to_vmem [thread:$0]  %s1, 256, %s21, [#allocation6], 128, 128, 8
    $region5: #{tpu_custom_call.1} parent=1 // pred_fallthru
      _
    // Predicated region
    $region6: #{tpu_custom_call.1} parent=1 // pred_check
      _
    $region7: #{tpu_custom_call.1} parent=1 // pred_check_branch
      %28 = sbr.rel (0) target = $region9
    $region8: #{tpu_custom_call.1} parent=1 // pred_region
      %s30 = ssub.s32 256, 256
      %31 = vsyncadd [#allocation9], %s30
      %s32 = sshll.u32 [#allocation8], 4
      %s33 = int_to_ptr.vmem [resolvable:$true] %s32
      %38 = dma.hbm_to_vmem [thread:$0]  %s2, 256, %s33, [#allocation9], 128, 128, 8
    $region9: #{tpu_custom_call.1} parent=1 // pred_fallthru
      _
    // Predicated region
    $region10: #{tpu_custom_call.1} parent=1 // pred_check
      _
    $region11: #{tpu_custom_call.1} parent=1 // pred_check_branch
      %40 = sbr.rel (0) target = $region13
    $region12: #{tpu_custom_call.1} parent=1 // pred_region
      %41 = dma.done [#allocation6], 256
    $region13: #{tpu_custom_call.1} parent=1 // pred_fallthru
      _
    // Predicated region
    $region14: #{tpu_custom_call.1} parent=1 // pred_check
      _
    $region15: #{tpu_custom_call.1} parent=1 // pred_check_branch
      %43 = sbr.rel (0) target = $region17
    $region16: #{tpu_custom_call.1} parent=1 // pred_region
      %44 = dma.done [#allocation9], 256
    $region17: #{tpu_custom_call.1} parent=1 // pred_fallthru
      _
    %p45 = scmp.eq.s32.totalorder 0, 0
    // Predicated region
    $region18: #{tpu_custom_call.1} parent=1 // pred_check
      %p46 = pneg %p45
    $region19: #{tpu_custom_call.1} parent=1 // pred_check_branch
      %48 = sbr.rel (%p46) target = $region21
    $region20: #{tpu_custom_call.1} parent=1 // pred_region
      %49 = vst [vmem:[#allocation2] sm:$0xff] 0.0
      %50 = vst [vmem:[#allocation2 + $0x8] sm:$0xff] 0.0
      %51 = vst [vmem:[#allocation2 + $0x10] sm:$0xff] 0.0
      %52 = vst [vmem:[#allocation2 + $0x18] sm:$0xff] 0.0
    $region21: #{tpu_custom_call.1} parent=1 // pred_fallthru
      _
    %s53 = sld [smem:[#allocation4]]
    %s54 = sld [smem:[#allocation4 + $0x1]]
    %s55 = smul.u32 0, 16
    %s56 = sadd.s32 %s55, 16
    %p57 = scmp.le.s32.totalorder %s56, %s53
    // Predicated region
    $region22: #{tpu_custom_call.1} parent=1 // pred_check
      %p58 = pneg %p57
    $region23: #{tpu_custom_call.1} parent=1 // pred_check_branch
      %60 = sbr.rel (%p58) target = $region25
    $region24: #{tpu_custom_call.1} parent=1 // pred_region
      %v61 = vld [vmem:[#allocation5] sm:$0xff]
      %v62 = vld [vmem:[#allocation5 + $0x8] sm:$0xff]
      %v63 = vld [vmem:[#allocation8] sm:$0xff]
      %v64 = vld [vmem:[#allocation8 + $0x8] sm:$0xff]
      %v65 = vand.u32 2147483647, %v61
      %v66 = vand.u32 2147483647, %v62
      %v67 = vsub.f32 0.0, %v65
      %v68 = vsub.f32 0.0, %v66
      %v69 = vmul.f32 %v67, 1.442695
      %v70 = vpow.pop %v69
      %v71 = vmul.f32 %v68, 1.442695
      %v72 = vpow.pop %v71
      %v73 = vmax.f32 %v61, 0.0
      %v74 = vmax.f32 %v62, 0.0
      %v75 = vmul.f32 %v61, %v63
      %v76 = vmul.f32 %v62, %v64
      %v77 = vsub.f32 %v73, %v75
      %v78 = vsub.f32 %v74, %v76
      %v79 = vadd.f32 %v70, 1.0
      %v80 = vlog2.pop %v79
      %v81 = vmul.f32 %v80, 0.6931472
      %v82 = vmul.f32 -0.5, %v70
      %v83 = vadd.f32 %v82, 1.0
      %v84 = vmul.f32 %v83, %v70
      %v85 = vand.u32 2147483647, %v70
      %vm86 = vcmp.lt.f32.partialorder %v85, 0.0004427343
      %v87 = vsel %vm86, %v84, %v81
      %v88 = vadd.f32 %v72, 1.0
      %v89 = vlog2.pop %v88
      %v90 = vmul.f32 %v89, 0.6931472
      %v91 = vmul.f32 -0.5, %v72
      %v92 = vadd.f32 %v91, 1.0
      %v93 = vmul.f32 %v92, %v72
      %v94 = vand.u32 2147483647, %v72
      %vm95 = vcmp.lt.f32.partialorder %v94, 0.0004427343
      %v96 = vsel %vm95, %v93, %v90
      %v97 = vadd.f32 %v77, %v87
      %v98 = vadd.f32 %v78, %v96
      %v99 = vadd.f32 %v70, 1.0
      %v100 = vadd.f32 %v72, 1.0
      %v101 = vrcp.pop %v99
      %v102 = vmul.f32 1.0, %v101
      %v103 = vrcp.pop %v100
      %v104 = vmul.f32 1.0, %v103
      %vm105 = vcmp.ge.f32.partialorder %v61, 0.0
      %vm106 = vcmp.ge.f32.partialorder %v62, 0.0
      %v107 = vmul.f32 %v70, %v102
      %v108 = vmul.f32 %v72, %v104
      %v109 = vsel %vm105, %v102, %v107
      %v110 = vsel %vm106, %v104, %v108
      %v111 = vmul.f32 %v109, %v63
      %v112 = vmul.f32 %v110, %v64
      %v113 = vld [vmem:[#allocation2] sm:$0xff]
      %v114 = vadd.f32 %v97, %v98
      %v115 = vadd.f32 %v113, %v114
      %116 = vst [vmem:[#allocation2] sm:$0xff] %v115
      %s117 = scalar_lea.vmem [#allocation2], 8
      %v118 = vld [vmem:[%s117] sm:$0xff]
      %v119 = vadd.f32 %v111, %v112
      %v120 = vadd.f32 %v118, %v119
      %121 = vst [vmem:[%s117] sm:$0xff] %v120
      %s122 = scalar_lea.vmem [#allocation2], 16
      %v123 = vld [vmem:[%s122] sm:$0xff]
      %v124 = vadd.f32 %v109, %v110
      %v125 = vadd.f32 %v123, %v124
      %126 = vst [vmem:[%s122] sm:$0xff] %v125
      %s127 = scalar_lea.vmem [#allocation2], 24
      %v128 = vld [vmem:[%s127] sm:$0xff]
      %v129 = vadd.f32 %v63, %v64
      %v130 = vadd.f32 %v128, %v129
      %131 = vst [vmem:[%s127] sm:$0xff] %v130
    $region25: #{tpu_custom_call.1} parent=1 // pred_fallthru
      _
    %p132 = scmp.gt.s32.totalorder %s56, %s53
    // Predicated region
    $region26: #{tpu_custom_call.1} parent=1 // pred_check
      %p133 = pneg %p132
    $region27: #{tpu_custom_call.1} parent=1 // pred_check_branch
      %135 = sbr.rel (%p133) target = $region29
    $region28: #{tpu_custom_call.1} parent=1 // pred_region
      %v136 = vlaneseq
      %v137 = vshrl.u32 %v136, 7
      %v138 = vadd.s32 %v137, 8
      %v139 = vstv %s55
      %v140 = vadd.s32 %v139, %v137
      %v141 = vadd.s32 %v139, %v138
      %v142 = vlaneseq
      %v143 = vand.u32 %v142, 127
      %v144 = vstv %s53
      %vm145 = vcmp.lt.s32.totalorder %v140, %v144
      %vm146 = vcmp.lt.s32.totalorder %v141, %v144
      %vm147 = vcmp.eq.s32.totalorder %v140, %v144
      %vm148 = vcmp.eq.s32.totalorder %v141, %v144
      %v149 = vstv %s54
      %vm150 = vcmp.lt.s32.totalorder %v143, %v149
      %vm151 = vmand %vm147, %vm150
      %vm152 = vmand %vm148, %vm150
      %vm153 = vmor %vm145, %vm151
      %vm154 = vmor %vm146, %vm152
      %v155 = vld [vmem:[#allocation5] sm:$0xff]
      %v156 = vld [vmem:[#allocation5 + $0x8] sm:$0xff]
      %v157 = vsel %vm153, %v155, 0.0
      %v158 = vsel %vm154, %v156, 0.0
      %v159 = vld [vmem:[#allocation8] sm:$0xff]
      %v160 = vld [vmem:[#allocation8 + $0x8] sm:$0xff]
      %v161 = vsel %vm153, %v159, 0.0
      %v162 = vsel %vm154, %v160, 0.0
      %v163 = vand.u32 2147483647, %v157
      %v164 = vand.u32 2147483647, %v158
      %v165 = vsub.f32 0.0, %v163
      %v166 = vsub.f32 0.0, %v164
      %v167 = vmul.f32 %v165, 1.442695
      %v168 = vpow.pop %v167
      %v169 = vmul.f32 %v166, 1.442695
      %v170 = vpow.pop %v169
      %v171 = vmax.f32 %v157, 0.0
      %v172 = vmax.f32 %v158, 0.0
      %v173 = vmul.f32 %v157, %v161
      %v174 = vmul.f32 %v158, %v162
      %v175 = vsub.f32 %v171, %v173
      %v176 = vsub.f32 %v172, %v174
      %v177 = vadd.f32 %v168, 1.0
      %v178 = vlog2.pop %v177
      %v179 = vmul.f32 %v178, 0.6931472
      %v180 = vmul.f32 -0.5, %v168
      %v181 = vadd.f32 %v180, 1.0
      %v182 = vmul.f32 %v181, %v168
      %v183 = vand.u32 2147483647, %v168
      %vm184 = vcmp.lt.f32.partialorder %v183, 0.0004427343
      %v185 = vsel %vm184, %v182, %v179
      %v186 = vadd.f32 %v170, 1.0
      %v187 = vlog2.pop %v186
      %v188 = vmul.f32 %v187, 0.6931472
      %v189 = vmul.f32 -0.5, %v170
      %v190 = vadd.f32 %v189, 1.0
      %v191 = vmul.f32 %v190, %v170
      %v192 = vand.u32 2147483647, %v170
      %vm193 = vcmp.lt.f32.partialorder %v192, 0.0004427343
      %v194 = vsel %vm193, %v191, %v188
      %v195 = vadd.f32 %v175, %v185
      %v196 = vadd.f32 %v176, %v194
      %v197 = vadd.f32 %v168, 1.0
      %v198 = vadd.f32 %v170, 1.0
      %v199 = vrcp.pop %v197
      %v200 = vmul.f32 1.0, %v199
      %v201 = vrcp.pop %v198
      %v202 = vmul.f32 1.0, %v201
      %vm203 = vcmp.ge.f32.partialorder %v157, 0.0
      %vm204 = vcmp.ge.f32.partialorder %v158, 0.0
      %v205 = vmul.f32 %v168, %v200
      %v206 = vmul.f32 %v170, %v202
      %v207 = vsel %vm203, %v200, %v205
      %v208 = vsel %vm204, %v202, %v206
      %v209 = vmul.f32 %v207, %v161
      %v210 = vmul.f32 %v208, %v162
      %v211 = vsel %vm153, 1, 0
      %v212 = vsel %vm154, 1, 0
      %v213 = vcvt.s32.f32 %v211
      %v214 = vcvt.s32.f32 %v212
      %v215 = vmul.f32 %v195, %v213
      %v216 = vmul.f32 %v196, %v214
      %v217 = vmul.f32 %v207, %v213
      %v218 = vmul.f32 %v208, %v214
      %v219 = vld [vmem:[#allocation2] sm:$0xff]
      %v220 = vadd.f32 %v215, %v216
      %v221 = vadd.f32 %v219, %v220
      %222 = vst [vmem:[#allocation2] sm:$0xff] %v221
      %s223 = scalar_lea.vmem [#allocation2], 8
      %v224 = vld [vmem:[%s223] sm:$0xff]
      %v225 = vadd.f32 %v209, %v210
      %v226 = vadd.f32 %v224, %v225
      %227 = vst [vmem:[%s223] sm:$0xff] %v226
      %s228 = scalar_lea.vmem [#allocation2], 16
      %v229 = vld [vmem:[%s228] sm:$0xff]
      %v230 = vadd.f32 %v217, %v218
      %v231 = vadd.f32 %v229, %v230
      %232 = vst [vmem:[%s228] sm:$0xff] %v231
      %s233 = scalar_lea.vmem [#allocation2], 24
      %v234 = vld [vmem:[%s233] sm:$0xff]
      %v235 = vadd.f32 %v161, %v162
      %v236 = vadd.f32 %v234, %v235
      %237 = vst [vmem:[%s233] sm:$0xff] %v236
    $region29: #{tpu_custom_call.1} parent=1 // pred_fallthru
      _
    // Predicated region
    $region30: #{tpu_custom_call.1} parent=1 // pred_check
      %p238 = pneg %p45
    $region31: #{tpu_custom_call.1} parent=1 // pred_check_branch
      %240 = sbr.rel (%p238) target = $region33
    $region32: #{tpu_custom_call.1} parent=1 // pred_region
      %v241 = vld [vmem:[#allocation2] sm:$0xff]
      %242 = vadd.xlane.f32.xlu0 %v241
      %v243 = vpop.xlane.xlu0 %242
      %v244 = vrot.slane %v243, 4
      %v245 = vadd.f32 %v243, %v244
      %v246 = vrot.slane %v245, 2
      %v247 = vadd.f32 %v245, %v246
      %v248 = vrot.slane %v247, 1
      %v249 = vadd.f32 %v247, %v248
      %s250 = vtos %v249
      %s251 = scalar_lea.smem [#allocation10], 0
      %252 = sst [smem:[%s251]] %s250
      %s253 = scalar_lea.vmem [#allocation2], 8
      %v254 = vld [vmem:[%s253] sm:$0xff]
      %255 = vadd.xlane.f32.xlu0 %v254
      %v256 = vpop.xlane.xlu0 %255
      %v257 = vrot.slane %v256, 4
      %v258 = vadd.f32 %v256, %v257
      %v259 = vrot.slane %v258, 2
      %v260 = vadd.f32 %v258, %v259
      %v261 = vrot.slane %v260, 1
      %v262 = vadd.f32 %v260, %v261
      %s263 = vtos %v262
      %s264 = scalar_lea.smem [#allocation10], 1
      %265 = sst [smem:[%s264]] %s263
      %s266 = scalar_lea.vmem [#allocation2], 16
      %v267 = vld [vmem:[%s266] sm:$0xff]
      %268 = vadd.xlane.f32.xlu0 %v267
      %v269 = vpop.xlane.xlu0 %268
      %v270 = vrot.slane %v269, 4
      %v271 = vadd.f32 %v269, %v270
      %v272 = vrot.slane %v271, 2
      %v273 = vadd.f32 %v271, %v272
      %v274 = vrot.slane %v273, 1
      %v275 = vadd.f32 %v273, %v274
      %s276 = vtos %v275
      %s277 = scalar_lea.smem [#allocation10], 2
      %278 = sst [smem:[%s277]] %s276
      %s279 = scalar_lea.vmem [#allocation2], 24
      %v280 = vld [vmem:[%s279] sm:$0xff]
      %281 = vadd.xlane.f32.xlu0 %v280
      %v282 = vpop.xlane.xlu0 %281
      %v283 = vrot.slane %v282, 4
      %v284 = vadd.f32 %v282, %v283
      %v285 = vrot.slane %v284, 2
      %v286 = vadd.f32 %v284, %v285
      %v287 = vrot.slane %v286, 1
      %v288 = vadd.f32 %v286, %v287
      %s289 = vtos %v288
      %s290 = scalar_lea.smem [#allocation10], 3
      %291 = sst [smem:[%s290]] %s289
    $region33: #{tpu_custom_call.1} parent=1 // pred_fallthru
      _
    // Predicated region
    $region34: #{tpu_custom_call.1} parent=1 // pred_check
      _
    $region35: #{tpu_custom_call.1} parent=1 // pred_check_branch
      %293 = sbr.rel (0) target = $region37
    $region36: #{tpu_custom_call.1} parent=1 // pred_region
      %s295 = ssub.s32 16, 16
      %296 = vsyncadd [#allocation7], %s295
      %299 = dma.smem_to_hbm [#allocation10], 16, %s3, [#allocation7]
    $region37: #{tpu_custom_call.1} parent=1 // pred_fallthru
      _
    // Predicated region
    $region38: #{tpu_custom_call.1} parent=1 // pred_check
      _
    $region39: #{tpu_custom_call.1} parent=1 // pred_check_branch
      %301 = sbr.rel (0) target = $region41
    $region40: #{tpu_custom_call.1} parent=1 // pred_region
      %302 = dma.done [#allocation7], 16
    $region41: #{tpu_custom_call.1} parent=1 // pred_fallthru
      _
    %303 = sfence
    %304 = vsyncpa [#allocation6], 1
    %305 = vsyncpa [#allocation9], 1
    %306 = vsyncpa [#allocation7], 1

</llo_original>
